<compile_context>
chip_gen: v5e
topology: v5e:2x2
jax: 0.10.0
libtpu: 0.0.40
codegen_flags: <defaults>
</compile_context>

<pallas_src>
import functools
import math

import jax
import jax.numpy as jnp
from jax.experimental import pallas as pl
from jax.experimental.pallas import tpu as pltpu


_TQ_CANDS = (512, 384, 256, 128)          # MXU / lane friendly tile sizes
_TILE_VMEM_BUDGET = 16 * 1024 * 1024      # per-step footprint target (~1/3 of scoped VMEM)


def _round_up(x, m):
    return (x + m - 1) // m * m


def _tpu_generation():
    """Best-effort TPU generation (5/6/7); 0 when unknown (treated conservatively)."""
    try:
        kind = jax.devices()[0].device_kind.lower()
    except Exception:
        return 0
    if "v7" in kind or "tpu7" in kind:
        return 7
    for g in (6, 5, 4):
        if f"v{g}" in kind:
            return g
    return 0


def _vmem_bytes(bh_tile, tq, tk, d, in_bytes, out_bytes):
    """Estimated VMEM per grid step: double-buffered Q/K/V/O blocks + scratch
    (m, l, fp32 acc, scaled-Q) + fp32 score/probability intermediates."""
    io = 2 * bh_tile * ((tq * d + 2 * tk * d) * in_bytes + tq * d * out_bytes)
    scratch = bh_tile * (2 * tq * 4 + tq * d * 4 + tq * d * in_bytes)
    interm = 2 * bh_tile * tq * tk * 4
    return io + scratch + interm


def _choose_tiles(seq_len, d, in_bytes, out_bytes, gen, budget):
    """Pick (tq, tk, seq_pad). Prefers big query tiles (less K/V re-streaming)
    and exact divisors (no pad/slice passes); both trade off via a streamed-work
    cost model. tk stays <=256 on v5e."""
    # Single-block path: whole sequence resident, no padding, no masking.
    if seq_len <= 512 and _vmem_bytes(1, seq_len, seq_len, d, in_bytes, out_bytes) <= budget:
        return seq_len, seq_len, seq_len

    def cost(t):
        sp = _round_up(seq_len, t)
        c = sp * sp / t                      # K/V re-stream + compute ~ seq_pad^2 / tq
        if sp != seq_len:
            c *= 1.25                        # pad/slice HBM passes + tail masking
        return c

    tq = min(_TQ_CANDS, key=cost)
    seq_pad = _round_up(seq_len, tq)

    tk_cands = (256, 128) if gen in (4, 5) else _TQ_CANDS
    tk = next((t for t in tk_cands if seq_pad % t == 0), 128)

    # Shrink (rare: very large d) until the per-step footprint fits the budget.
    while _vmem_bytes(1, tq, tk, d, in_bytes, out_bytes) > budget and tk > 128:
        tk = next((t for t in (384, 256, 128) if t < tk and seq_pad % t == 0), 128)
    while _vmem_bytes(1, tq, tk, d, in_bytes, out_bytes) > budget and tq > 128:
        tq = next((t for t in (384, 256, 128) if t < tq and seq_pad % t == 0), 128)
    return tq, tk, seq_pad


def _pick_bh_tile(bh, n_q, tq, tk, d, in_bytes, out_bytes, budget):
    """Pack several (batch, head) pairs per grid step on the tiny single-block
    path, bounded by the true VMEM footprint (fp32 s/p + acc + blocks) and
    keeping >= 2 parallel grid slices when possible (v7x has 2 TensorCores)."""
    best = 1
    for cand in range(1, bh + 1):
        if bh % cand:
            continue
        if _vmem_bytes(cand, tq, tk, d, in_bytes, out_bytes) > budget:
            continue
        if (bh // cand) * n_q < 2 and bh * n_q >= 2:
            continue
        best = cand
    return best


def _flash_attn_kernel(q_ref, k_ref, v_ref, o_ref, m_sc, l_sc, acc_sc, qs_sc,
                       *, inv_scale, kv_len, tk, needs_mask, exp_dtype):
    kv = pl.program_id(2)

    @pl.when(kv == 0)
    def _init():
        # Q is resident across the kv axis: scale it by 1/sqrt(d) once per
        # (bh, q) block into a native-dtype scratch instead of every kv step.
        qs_sc[...] = (q_ref[...] * inv_scale).astype(qs_sc.dtype)
        m_sc[...] = jnp.full_like(m_sc, -jnp.inf)
        l_sc[...] = jnp.zeros_like(l_sc)
        acc_sc[...] = jnp.zeros_like(acc_sc)

    q = qs_sc[...]
    k = k_ref[...]

    # s[b, i, j] = sum_d q[b, i, d] * k[b, j, d]  (contraction over d, no k.T)
    s = jax.lax.dot_general(
        q, k,
        dimension_numbers=(((2,), (2,)), ((0,), (0,))),
        preferred_element_type=jnp.float32,
    )                                        # (bh_tile, tq, tk) fp32

    if needs_mask:
        # Only kv blocks that extend past the true sequence length contain
        # padded key columns; skip the iota/compare/select on full blocks.
        def _mask_tail(args):
            scores, kv_idx = args
            col = jax.lax.broadcasted_iota(jnp.int32, scores.shape, 2) + kv_idx * tk
            return jnp.where(col < kv_len, scores, jnp.float32(-1e30))

        s = jax.lax.cond((kv + 1) * tk > kv_len, _mask_tail, lambda a: a[0], (s, kv))

    # Online (streaming) softmax update.
    m_prev = m_sc[...]
    m_new = jnp.maximum(m_prev, jnp.max(s, axis=-1, keepdims=True))
    alpha = jnp.exp(m_prev - m_new)                       # (bh_tile, tq, 1) fp32
    p = jnp.exp((s - m_new).astype(exp_dtype))            # bulk exp; bf16 EUP on v6e/v7x

    l_sc[...] = alpha * l_sc[...] + jnp.sum(p.astype(jnp.float32), axis=-1, keepdims=True)

    pv = jax.lax.dot_general(
        p.astype(v_ref.dtype), v_ref[...],
        dimension_numbers=(((2,), (1,)), ((0,), (0,))),
        preferred_element_type=jnp.float32,
    )                                        # (bh_tile, tq, d) fp32
    acc_sc[...] = alpha * acc_sc[...] + pv
    m_sc[...] = m_new

    @pl.when(kv == pl.num_programs(2) - 1)
    def _finalize():
        inv_l = pl.reciprocal(l_sc[...], approx=True)     # EUP slot, ~free
        o_ref[...] = (acc_sc[...] * inv_l).astype(o_ref.dtype)


def scale_dot_product_attention(query, key, value, mask=None, *, compute_dtype=None):
    """query/key/value: (batch, head, seq_len, d_model) -> same shape output."""
    # TODO(synk): the reference PyTorch forward accepts `mask` but never applies it.
    assert mask is None, "reference ScaleDotProductAttention never applies mask"
    assert query.shape == key.shape == value.shape
    batch, head, seq_len, d_model = query.shape
    bh = batch * head
    out_dtype = query.dtype

    q = query.reshape(bh, seq_len, d_model)
    k = key.reshape(bh, seq_len, d_model)
    v = value.reshape(bh, seq_len, d_model)
    if compute_dtype is not None:
        q = q.astype(compute_dtype)
        k = k.astype(compute_dtype)
        v = v.astype(compute_dtype)

    gen = _tpu_generation()
    in_bytes = q.dtype.itemsize
    out_bytes = jnp.dtype(out_dtype).itemsize

    tq, tk, seq_pad = _choose_tiles(seq_len, d_model, in_bytes, out_bytes, gen,
                                    _TILE_VMEM_BUDGET)
    needs_mask = seq_pad != seq_len
    if needs_mask:
        pad = ((0, 0), (0, seq_pad - seq_len), (0, 0))
        q = jnp.pad(q, pad)
        k = jnp.pad(k, pad)
        v = jnp.pad(v, pad)

    n_q = seq_pad // tq
    n_kv = seq_pad // tk
    if n_q == 1 and n_kv == 1:
        bh_tile = _pick_bh_tile(bh, n_q, tq, tk, d_model, in_bytes, out_bytes,
                                _TILE_VMEM_BUDGET)
    else:
        bh_tile = 1
    grid = (bh // bh_tile, n_q, n_kv)

    # bf16 exp only where the EUP has a bf16 path (v6e/v7x) and inputs are 16-bit.
    use_bf16_exp = gen >= 6 and jnp.issubdtype(q.dtype, jnp.floating) and in_bytes == 2
    exp_dtype = jnp.bfloat16 if use_bf16_exp else jnp.float32

    # Explicit scoped-VMEM limit, generation aware (v7x has only 64 MiB physical).
    est = _vmem_bytes(bh_tile, tq, tk, d_model, in_bytes, out_bytes)
    cap = (48 << 20) if (gen >= 7 or gen == 0) else (96 << 20)
    vmem_limit = int(min(cap, max(32 << 20, 2 * est + (2 << 20))))

    q_spec = pl.BlockSpec((bh_tile, tq, d_model), lambda b, qi, ki: (b, qi, 0))
    kv_spec = pl.BlockSpec((bh_tile, tk, d_model), lambda b, qi, ki: (b, ki, 0))
    o_spec = pl.BlockSpec((bh_tile, tq, d_model), lambda b, qi, ki: (b, qi, 0))

    kernel = functools.partial(
        _flash_attn_kernel,
        inv_scale=1.0 / math.sqrt(d_model),
        kv_len=seq_len,
        tk=tk,
        needs_mask=needs_mask,
        exp_dtype=exp_dtype,
    )

    out = pl.pallas_call(
        kernel,
        out_shape=jax.ShapeDtypeStruct((bh, seq_pad, d_model), out_dtype),
        grid_spec=pltpu.PrefetchScalarGridSpec(
            num_scalar_prefetch=0,
            grid=grid,
            in_specs=[q_spec, kv_spec, kv_spec],
            out_specs=o_spec,
            scratch_shapes=[
                pltpu.VMEM((bh_tile, tq, 1), jnp.float32),        # running max
                pltpu.VMEM((bh_tile, tq, 1), jnp.float32),        # running sum
                pltpu.VMEM((bh_tile, tq, d_model), jnp.float32),  # fp32 accumulator
                pltpu.VMEM((bh_tile, tq, d_model), q.dtype),      # scaled Q staging
            ],
        ),
        compiler_params=pltpu.CompilerParams(
            dimension_semantics=("parallel", "parallel", "arbitrary"),
            vmem_limit_bytes=vmem_limit,
        ),
    )(q, k, v)

    if needs_mask:
        out = out[:, :seq_len, :]
    return out.reshape(batch, head, seq_len, d_model)


if __name__ == "__main__":
    def _reference(query, key, value):
        d_model = query.shape[-1]
        score = jnp.einsum("bhqd,bhkd->bhqk", query, key) / math.sqrt(d_model)
        p = jax.nn.softmax(score, axis=-1)
        return jnp.einsum("bhqk,bhkd->bhqd", p, value)

    def _check(shape, seed, tol):
        kq, kk, kv_ = jax.random.split(jax.random.PRNGKey(seed), 3)
        q = jax.random.normal(kq, shape, dtype=jnp.float32)
        k = jax.random.normal(kk, shape, dtype=jnp.float32)
        v = jax.random.normal(kv_, shape, dtype=jnp.float32)
        out = jax.block_until_ready(scale_dot_product_attention(q, k, v))
        ref = _reference(q, k, v)
        assert out.shape == ref.shape
        assert jnp.allclose(out, ref, atol=tol, rtol=tol), f"mismatch for shape {shape}"

    # Small shape consistent with the module: single-block, packed-heads path.
    _check((2, 4, 8, 32), 0, 1e-2)
    # Single-block path with a larger lane-dense tile (no padding, no mask).
    _check((1, 2, 384, 64), 1, 1e-2)
    # Long-sequence flash path with tail padding + last-block-only masking.
    _check((1, 1, 600, 64), 2, 2e-2)
    # Long-sequence flash path with exact-divisor tiles (no padding).
    _check((1, 1, 1024, 64), 3, 2e-2)

    print("KERNEL_OK")
</pallas_src>

<mosaic_0001>
module attributes {stable_mosaic.version = 11 : i64} {
  func.func @_flash_attn_kernel(%arg0: i32, %arg1: i32, %arg2: i32, %arg3: memref<4x8x32xf32, #tpu.memory_space<vmem>>, %arg4: memref<4x8x32xf32, #tpu.memory_space<vmem>>, %arg5: memref<4x8x32xf32, #tpu.memory_space<vmem>>, %arg6: memref<4x8x32xf32, #tpu.memory_space<vmem>>, %arg7: memref<4x8x1xf32, #tpu.memory_space<vmem>>, %arg8: memref<4x8x1xf32, #tpu.memory_space<vmem>>, %arg9: memref<4x8x32xf32, #tpu.memory_space<vmem>>, %arg10: memref<4x8x32xf32, #tpu.memory_space<vmem>>) attributes {dimension_semantics = [#tpu.dimension_semantics<parallel>, #tpu.dimension_semantics<parallel>, #tpu.dimension_semantics<arbitrary>], iteration_bounds = array<i64: 2, 1, 1>, scalar_prefetch = 0 : i64, scratch_operands = 4 : i64, tpu.core_type = #tpu.core_type<tc>, window_params = [{transform_indices = @transform_0, window_bounds = array<i64: 4, 8, 32>}, {transform_indices = @transform_1, window_bounds = array<i64: 4, 8, 32>}, {transform_indices = @transform_2, window_bounds = array<i64: 4, 8, 32>}, {transform_indices = @transform_3, window_bounds = array<i64: 4, 8, 32>}]} {
    %c0_i32 = arith.constant 0 : i32
    %0 = arith.cmpi eq, %arg2, %c0_i32 : i32
    %1 = arith.extui %0 : i1 to i32
    %c0_i32_0 = arith.constant 0 : i32
    %2 = arith.cmpi ne, %1, %c0_i32_0 : i32
    scf.if %2 {
      %c0_32 = arith.constant 0 : index
      %c0_33 = arith.constant 0 : index
      %c0_34 = arith.constant 0 : index
      %32 = vector.load %arg3[%c0_32, %c0_33, %c0_34] : memref<4x8x32xf32, #tpu.memory_space<vmem>>, vector<4x8x32xf32>
      %cst_35 = arith.constant 0.176776692 : f32
      %33 = vector.broadcast %cst_35 : f32 to vector<4x8x32xf32>
      %34 = arith.mulf %32, %33 : vector<4x8x32xf32>
      %c0_36 = arith.constant 0 : index
      %c0_37 = arith.constant 0 : index
      %c0_38 = arith.constant 0 : index
      %35 = vector.load %arg10[%c0_36, %c0_37, %c0_38] : memref<4x8x32xf32, #tpu.memory_space<vmem>>, vector<4x8x32xf32>
      tpu.vector_store %arg10[%c0_36, %c0_37, %c0_38], %34 {strides = array<i32>} : memref<4x8x32xf32, #tpu.memory_space<vmem>>, vector<4x8x32xf32>,
      %cst_39 = arith.constant 0xFF800000 : f32
      %36 = vector.broadcast %cst_39 : f32 to vector<4x8x1xf32>
      %c0_40 = arith.constant 0 : index
      %c0_41 = arith.constant 0 : index
      %c0_42 = arith.constant 0 : index
      %37 = vector.load %arg7[%c0_40, %c0_41, %c0_42] : memref<4x8x1xf32, #tpu.memory_space<vmem>>, vector<4x8x1xf32>
      tpu.vector_store %arg7[%c0_40, %c0_41, %c0_42], %36 {strides = array<i32>} : memref<4x8x1xf32, #tpu.memory_space<vmem>>, vector<4x8x1xf32>,
      %cst_43 = arith.constant 0.000000e+00 : f32
      %38 = vector.broadcast %cst_43 : f32 to vector<4x8x1xf32>
      %c0_44 = arith.constant 0 : index
      %c0_45 = arith.constant 0 : index
      %c0_46 = arith.constant 0 : index
      %39 = vector.load %arg8[%c0_44, %c0_45, %c0_46] : memref<4x8x1xf32, #tpu.memory_space<vmem>>, vector<4x8x1xf32>
      tpu.vector_store %arg8[%c0_44, %c0_45, %c0_46], %38 {strides = array<i32>} : memref<4x8x1xf32, #tpu.memory_space<vmem>>, vector<4x8x1xf32>,
      %cst_47 = arith.constant 0.000000e+00 : f32
      %40 = vector.broadcast %cst_47 : f32 to vector<4x8x32xf32>
      %c0_48 = arith.constant 0 : index
      %c0_49 = arith.constant 0 : index
      %c0_50 = arith.constant 0 : index
      %41 = vector.load %arg9[%c0_48, %c0_49, %c0_50] : memref<4x8x32xf32, #tpu.memory_space<vmem>>, vector<4x8x32xf32>
      tpu.vector_store %arg9[%c0_48, %c0_49, %c0_50], %40 {strides = array<i32>} : memref<4x8x32xf32, #tpu.memory_space<vmem>>, vector<4x8x32xf32>,
    } else {
    }
    %c0 = arith.constant 0 : index
    %c0_1 = arith.constant 0 : index
    %c0_2 = arith.constant 0 : index
    %3 = vector.load %arg10[%c0, %c0_1, %c0_2] : memref<4x8x32xf32, #tpu.memory_space<vmem>>, vector<4x8x32xf32>
    %c0_3 = arith.constant 0 : index
    %c0_4 = arith.constant 0 : index
    %c0_5 = arith.constant 0 : index
    %4 = vector.load %arg4[%c0_3, %c0_4, %c0_5] : memref<4x8x32xf32, #tpu.memory_space<vmem>>, vector<4x8x32xf32>
    %cst = arith.constant dense<0.000000e+00> : vector<4x8x8xf32>
    %5 = tpu.matmul %3, %4, %cst {dimension_numbers = #tpu.dot_dimension_numbers<[2], [2], [1], [1], [0, 0, 0, 1, 1, 1], [0], [0]>} : vector<4x8x32xf32>, vector<4x8x32xf32>, vector<4x8x8xf32> -> vector<4x8x8xf32>
    %c0_6 = arith.constant 0 : index
    %c0_7 = arith.constant 0 : index
    %c0_8 = arith.constant 0 : index
    %6 = vector.load %arg7[%c0_6, %c0_7, %c0_8] : memref<4x8x1xf32, #tpu.memory_space<vmem>>, vector<4x8x1xf32>
    %cst_9 = arith.constant dense<0xFF800000> : vector<4x8xf32>
    %7 = vector.multi_reduction <maximumf>, %5, %cst_9 [2] : vector<4x8x8xf32> to vector<4x8xf32>
    %8 = vector.shape_cast %7 : vector<4x8xf32> to vector<4x8x1xf32>
    %9 = arith.maximumf %6, %8 : vector<4x8x1xf32>
    %10 = arith.subf %6, %9 : vector<4x8x1xf32>
    %11 = math.exp %10 : vector<4x8x1xf32>
    %12 = vector.broadcast %9 : vector<4x8x1xf32> to vector<4x8x8xf32>
    %13 = arith.subf %5, %12 : vector<4x8x8xf32>
    %14 = math.exp %13 : vector<4x8x8xf32>
    %c0_10 = arith.constant 0 : index
    %c0_11 = arith.constant 0 : index
    %c0_12 = arith.constant 0 : index
    %15 = vector.load %arg8[%c0_10, %c0_11, %c0_12] : memref<4x8x1xf32, #tpu.memory_space<vmem>>, vector<4x8x1xf32>
    %16 = arith.mulf %11, %15 : vector<4x8x1xf32>
    %cst_13 = arith.constant dense<0.000000e+00> : vector<4x8xf32>
    %17 = vector.multi_reduction <add>, %14, %cst_13 [2] : vector<4x8x8xf32> to vector<4x8xf32>
    %18 = vector.shape_cast %17 : vector<4x8xf32> to vector<4x8x1xf32>
    %19 = arith.addf %16, %18 : vector<4x8x1xf32>
    %c0_14 = arith.constant 0 : index
    %c0_15 = arith.constant 0 : index
    %c0_16 = arith.constant 0 : index
    %20 = vector.load %arg8[%c0_14, %c0_15, %c0_16] : memref<4x8x1xf32, #tpu.memory_space<vmem>>, vector<4x8x1xf32>
    tpu.vector_store %arg8[%c0_14, %c0_15, %c0_16], %19 {strides = array<i32>} : memref<4x8x1xf32, #tpu.memory_space<vmem>>, vector<4x8x1xf32>,
    %c0_17 = arith.constant 0 : index
    %c0_18 = arith.constant 0 : index
    %c0_19 = arith.constant 0 : index
    %21 = vector.load %arg5[%c0_17, %c0_18, %c0_19] : memref<4x8x32xf32, #tpu.memory_space<vmem>>, vector<4x8x32xf32>
    %cst_20 = arith.constant dense<0.000000e+00> : vector<4x8x32xf32>
    %22 = tpu.matmul %14, %21, %cst_20 {dimension_numbers = #tpu.dot_dimension_numbers<[2], [1], [1], [2], [0, 0, 0, 1, 1, 2], [0], [0]>} : vector<4x8x8xf32>, vector<4x8x32xf32>, vector<4x8x32xf32> -> vector<4x8x32xf32>
    %c0_21 = arith.constant 0 : index
    %c0_22 = arith.constant 0 : index
    %c0_23 = arith.constant 0 : index
    %23 = vector.load %arg9[%c0_21, %c0_22, %c0_23] : memref<4x8x32xf32, #tpu.memory_space<vmem>>, vector<4x8x32xf32>
    %24 = vector.broadcast %11 : vector<4x8x1xf32> to vector<4x8x32xf32>
    %25 = arith.mulf %24, %23 : vector<4x8x32xf32>
    %26 = arith.addf %25, %22 : vector<4x8x32xf32>
    %c0_24 = arith.constant 0 : index
    %c0_25 = arith.constant 0 : index
    %c0_26 = arith.constant 0 : index
    %27 = vector.load %arg9[%c0_24, %c0_25, %c0_26] : memref<4x8x32xf32, #tpu.memory_space<vmem>>, vector<4x8x32xf32>
    tpu.vector_store %arg9[%c0_24, %c0_25, %c0_26], %26 {strides = array<i32>} : memref<4x8x32xf32, #tpu.memory_space<vmem>>, vector<4x8x32xf32>,
    %c0_27 = arith.constant 0 : index
    %c0_28 = arith.constant 0 : index
    %c0_29 = arith.constant 0 : index
    %28 = vector.load %arg7[%c0_27, %c0_28, %c0_29] : memref<4x8x1xf32, #tpu.memory_space<vmem>>, vector<4x8x1xf32>
    tpu.vector_store %arg7[%c0_27, %c0_28, %c0_29], %9 {strides = array<i32>} : memref<4x8x1xf32, #tpu.memory_space<vmem>>, vector<4x8x1xf32>,
    %c0_i32_30 = arith.constant 0 : i32
    %29 = arith.cmpi eq, %arg2, %c0_i32_30 : i32
    %30 = arith.extui %29 : i1 to i32
    %c0_i32_31 = arith.constant 0 : i32
    %31 = arith.cmpi ne, %30, %c0_i32_31 : i32
    scf.if %31 {
      %c0_32 = arith.constant 0 : index
      %c0_33 = arith.constant 0 : index
      %c0_34 = arith.constant 0 : index
      %32 = vector.load %arg8[%c0_32, %c0_33, %c0_34] : memref<4x8x1xf32, #tpu.memory_space<vmem>>, vector<4x8x1xf32>
      %33 = tpu.reciprocal %32 {approx = true} : vector<4x8x1xf32> -> vector<4x8x1xf32>
      %c0_35 = arith.constant 0 : index
      %c0_36 = arith.constant 0 : index
      %c0_37 = arith.constant 0 : index
      %34 = vector.load %arg9[%c0_35, %c0_36, %c0_37] : memref<4x8x32xf32, #tpu.memory_space<vmem>>, vector<4x8x32xf32>
      %35 = vector.broadcast %33 : vector<4x8x1xf32> to vector<4x8x32xf32>
      %36 = arith.mulf %34, %35 : vector<4x8x32xf32>
      %c0_38 = arith.constant 0 : index
      %c0_39 = arith.constant 0 : index
      %c0_40 = arith.constant 0 : index
      %37 = vector.load %arg6[%c0_38, %c0_39, %c0_40] : memref<4x8x32xf32, #tpu.memory_space<vmem>>, vector<4x8x32xf32>
      tpu.vector_store %arg6[%c0_38, %c0_39, %c0_40], %36 {strides = array<i32>} : memref<4x8x32xf32, #tpu.memory_space<vmem>>, vector<4x8x32xf32>,
    } else {
    }
    return
  }
  func.func @transform_0(%arg0: i32, %arg1: i32, %arg2: i32) -> (i32, i32, i32) {
    %c0_i32 = arith.constant 0 : i32
    %c0_i32_0 = arith.constant 0 : i32
    return %arg0, %arg1, %c0_i32 : i32, i32, i32
  }
  func.func @transform_1(%arg0: i32, %arg1: i32, %arg2: i32) -> (i32, i32, i32) {
    %c0_i32 = arith.constant 0 : i32
    %c0_i32_0 = arith.constant 0 : i32
    return %arg0, %arg2, %c0_i32 : i32, i32, i32
  }
  func.func @transform_2(%arg0: i32, %arg1: i32, %arg2: i32) -> (i32, i32, i32) {
    %c0_i32 = arith.constant 0 : i32
    %c0_i32_0 = arith.constant 0 : i32
    return %arg0, %arg2, %c0_i32 : i32, i32, i32
  }
  func.func @transform_3(%arg0: i32, %arg1: i32, %arg2: i32) -> (i32, i32, i32) {
    %c0_i32 = arith.constant 0 : i32
    %c0_i32_0 = arith.constant 0 : i32
    return %arg0, %arg1, %c0_i32 : i32, i32, i32
  }
}

</mosaic_0001>

<llo_original>
// kernel: tpu_custom_call.1
$region0: #{tpu_custom_call.1}
  #allocation0 [shape = 'u32[]', space=smem, size = 0x4, offset = 0x4, fixed_abs, tag = 'smem constant byte address 0x4 - core index']
  #allocation1 [shape = 'u32[72,128]{1,0:T(1,128)}', space=vmem, size = 0x9000, scoped, tag = 'internal scratch']
  #allocation2 [shape = 'f32[4,8,1]{2,1,0:T(8,128)}', space=vmem, size = 0x4000, scoped, tag = 'scratch operand']
  #allocation3 [shape = 'f32[4,8,1]{2,1,0:T(8,128)}', space=vmem, size = 0x4000, scoped, tag = 'scratch operand']
  #allocation4 [shape = 'f32[4,8,32]{2,1,0:T(8,128)}', space=vmem, size = 0x4000, scoped, tag = 'scratch operand']
  #allocation5 [shape = 'f32[4,8,32]{2,1,0:T(8,128)}', space=vmem, size = 0x4000, scoped, tag = 'scratch operand']
  %s0 = inlined_call_operand.hbm [shape: f32[8,8,32], index: 0, kind: input, shape index: {}]
  %s1 = inlined_call_operand.hbm [shape: f32[8,8,32], index: 1, kind: input, shape index: {}]
  %s2 = inlined_call_operand.hbm [shape: f32[8,8,32], index: 2, kind: input, shape index: {}]
  %s3 = inlined_call_operand.hbm [shape: f32[8,8,32], index: 3, kind: output, shape index: {}]
  %s4 = sld [smem:[#allocation0]]
  $region65: #{tpu_custom_call.1} parent=0
    _
  %s6 = ssub.s32 1, %s4
  %s7 = scalar_select 0, %s6, %s4
  $region1: #{tpu_custom_call.1} parent=0
    #allocation6 [shape = 'u8[32768]{0}', space=vmem, size = 0x8000, scoped, tag = 'input window, operand 0']
    #allocation7 [shape = 's32[2]{0}', space=sflag, size = 0x8, scoped, tag = 'scoped memory for tpu_custom_call.1']
    #allocation8 [shape = 's32[2]{0}', space=sflag, size = 0x8, scoped, tag = 'scoped memory for tpu_custom_call.1']
    #allocation9 [shape = 'u8[32768]{0}', space=vmem, size = 0x8000, scoped, tag = 'input window, operand 1']
    #allocation10 [shape = 's32[2]{0}', space=sflag, size = 0x8, scoped, tag = 'scoped memory for tpu_custom_call.1']
    #allocation11 [shape = 'u8[32768]{0}', space=vmem, size = 0x8000, scoped, tag = 'input window, operand 2']
    #allocation12 [shape = 'u8[32768]{0}', space=vmem, size = 0x8000, scoped, tag = 'output window, operand 0']
    %8 = vsyncpa [#allocation7], 0
    %s9 = scalar_lea.sflag [#allocation7], 1
    %10 = vsyncpa %s9, 0
    %11 = vsyncpa [#allocation10], 0
    %s12 = scalar_lea.sflag [#allocation10], 1
    %13 = vsyncpa %s12, 0
    %14 = vsyncpa [#allocation8], 0
    %s15 = scalar_lea.sflag [#allocation8], 1
    %16 = vsyncpa %s15, 0
    loop: start=0, step=1, limit=4
    $region2: #{tpu_custom_call.1} parent=1 // loop_pre_header
      _
    $region3: #{tpu_custom_call.1} parent=1 // loop_header
      %s18 = sphi 0, %s22
      %p19 = scmp.ge.s32.totalorder %s18, 4
      %s25 = sphi 0, %s44
      %s26 = sphi 0, %s40
      %s27 = sphi 0, %s36
      %s28 = sphi 0, %s25
      %s29 = sphi 0, %s26
      %s30 = sphi 0, %s27
      %s31 = sphi 0, %s28
      %s32 = sphi 0, %s29
      %s33 = sphi 0, %s30
      %s49 = sphi 0, %s51
      %s52 = sphi 0, %s49
      %s53 = sphi 0, %s52
      %s69 = sphi 0, %s53
      %s77 = sphi 0, %s79
      %s80 = sphi 0, %s77
      %s81 = sphi 0, %s80
      %s97 = sphi 0, %s81
      %s105 = sphi 0, %s107
      %s108 = sphi 0, %s105
      %s109 = sphi 0, %s108
      %s125 = sphi 0, %s109
      %s133 = sphi 0, %s135
      %s136 = sphi 0, %s133
      %s137 = sphi 0, %s136
      %s153 = sphi 0, %s137
    $region4: #{tpu_custom_call.1} parent=1 // loop_header_branch
      %21 = sbr.rel (%p19) target = $region8
    $region5: #{tpu_custom_call.1} parent=1 // loop_body
      %s23 = ssub.s32 %s18, 1
      %s24 = ssub.s32 %s18, 2
      %s34 = sadd.s32 1, %s27
      %p35 = scmp.ge.s32.totalorder %s34, 1
      %s36 = scalar_select %p35, 0, %s34
      %s37 = sadd.s32 1, %s26
      %s38 = scalar_select %p35, %s37, %s26
      %p39 = scmp.ge.s32.totalorder %s38, 1
      %s40 = scalar_select %p39, 0, %s38
      %s41 = sadd.s32 1, %s25
      %s42 = scalar_select %p39, %s41, %s25
      %p43 = scmp.ge.s32.totalorder %s42, 2
      %s44 = scalar_select %p43, 0, %s42
      %s45 = ssub.s32 %s25, %s44
      %s46 = ssub.s32 %s26, %s40
      %s47 = sor.u32 %s45, %s46
      %p48 = scmp.eq.s32.totalorder %s47, 0
      %s50 = sadd.s32 %s49, 1
      %s51 = scalar_select %p48, %s49, %s50
      %p54 = pneg %p48
      %p55 = scmp.eq.s32.totalorder %s18, 1
      %p56 = por %p54, %p55
      %p57 = scmp.ne.s32.totalorder %s49, %s52
      %p58 = scmp.eq.s32.totalorder %s18, 0
      %p59 = por %p57, %p58
      %p60 = scmp.ne.s32.totalorder %s49, %s52
      %p61 = scmp.eq.s32.totalorder %s23, 1
      %p62 = por %p60, %p61
      %p63 = scmp.ne.s32.totalorder %s52, %s53
      %p64 = scmp.eq.s32.totalorder %s23, 0
      %p65 = por %p63, %p64
      %p66 = scmp.ne.s32.totalorder %s52, %s53
      %p67 = scmp.eq.s32.totalorder %s24, 1
      %p68 = por %p66, %p67
      %p70 = scmp.ne.s32.totalorder %s53, %s69
      %p71 = scmp.eq.s32.totalorder %s24, 0
      %p72 = por %p70, %p71
      %s73 = ssub.s32 %s25, %s44
      %s74 = ssub.s32 %s27, %s36
      %s75 = sor.u32 %s73, %s74
      %p76 = scmp.eq.s32.totalorder %s75, 0
      %s78 = sadd.s32 %s77, 1
      %s79 = scalar_select %p76, %s77, %s78
      %p82 = pneg %p76
      %p83 = scmp.eq.s32.totalorder %s18, 1
      %p84 = por %p82, %p83
      %p85 = scmp.ne.s32.totalorder %s77, %s80
      %p86 = scmp.eq.s32.totalorder %s18, 0
      %p87 = por %p85, %p86
      %p88 = scmp.ne.s32.totalorder %s77, %s80
      %p89 = scmp.eq.s32.totalorder %s23, 1
      %p90 = por %p88, %p89
      %p91 = scmp.ne.s32.totalorder %s80, %s81
      %p92 = scmp.eq.s32.totalorder %s23, 0
      %p93 = por %p91, %p92
      %p94 = scmp.ne.s32.totalorder %s80, %s81
      %p95 = scmp.eq.s32.totalorder %s24, 1
      %p96 = por %p94, %p95
      %p98 = scmp.ne.s32.totalorder %s81, %s97
      %p99 = scmp.eq.s32.totalorder %s24, 0
      %p100 = por %p98, %p99
      %s101 = ssub.s32 %s25, %s44
      %s102 = ssub.s32 %s27, %s36
      %s103 = sor.u32 %s101, %s102
      %p104 = scmp.eq.s32.totalorder %s103, 0
      %s106 = sadd.s32 %s105, 1
      %s107 = scalar_select %p104, %s105, %s106
      %p110 = pneg %p104
      %p111 = scmp.eq.s32.totalorder %s18, 1
      %p112 = por %p110, %p111
      %p113 = scmp.ne.s32.totalorder %s105, %s108
      %p114 = scmp.eq.s32.totalorder %s18, 0
      %p115 = por %p113, %p114
      %p116 = scmp.ne.s32.totalorder %s105, %s108
      %p117 = scmp.eq.s32.totalorder %s23, 1
      %p118 = por %p116, %p117
      %p119 = scmp.ne.s32.totalorder %s108, %s109
      %p120 = scmp.eq.s32.totalorder %s23, 0
      %p121 = por %p119, %p120
      %p122 = scmp.ne.s32.totalorder %s108, %s109
      %p123 = scmp.eq.s32.totalorder %s24, 1
      %p124 = por %p122, %p123
      %p126 = scmp.ne.s32.totalorder %s109, %s125
      %p127 = scmp.eq.s32.totalorder %s24, 0
      %p128 = por %p126, %p127
      %s129 = ssub.s32 %s25, %s44
      %s130 = ssub.s32 %s26, %s40
      %s131 = sor.u32 %s129, %s130
      %p132 = scmp.eq.s32.totalorder %s131, 0
      %s134 = sadd.s32 %s133, 1
      %s135 = scalar_select %p132, %s133, %s134
      %p138 = pneg %p132
      %p139 = scmp.eq.s32.totalorder %s18, 1
      %p140 = por %p138, %p139
      %p141 = scmp.ne.s32.totalorder %s133, %s136
      %p142 = scmp.eq.s32.totalorder %s18, 0
      %p143 = por %p141, %p142
      %p144 = scmp.ne.s32.totalorder %s133, %s136
      %p145 = scmp.eq.s32.totalorder %s23, 1
      %p146 = por %p144, %p145
      %p147 = scmp.ne.s32.totalorder %s136, %s137
      %p148 = scmp.eq.s32.totalorder %s23, 0
      %p149 = por %p147, %p148
      %p150 = scmp.ne.s32.totalorder %s136, %s137
      %p151 = scmp.eq.s32.totalorder %s24, 1
      %p152 = por %p150, %p151
      %p154 = scmp.ne.s32.totalorder %s137, %s153
      %p155 = scmp.eq.s32.totalorder %s24, 0
      %p156 = por %p154, %p155
      %p157 = scmp.le.s32.totalorder 1, %s18
      %p158 = scmp.lt.s32.totalorder %s18, 3
      %p159 = pnand %p157, %p158
      %p160 = pneg %p159
      // Predicated region
      $region9: #{tpu_custom_call.1} parent=5 // pred_check
        _
      $region10: #{tpu_custom_call.1} parent=5 // pred_check_branch
        %162 = sbr.rel (%p159) target = $region12
      $region11: #{tpu_custom_call.1} parent=5 // pred_region
        %s163 = ssub.s32 %s18, 1
      $region12: #{tpu_custom_call.1} parent=5 // pred_fallthru
        _
      %p164 = scmp.lt.s32.totalorder %s18, 2
      // Predicated region
      $region13: #{tpu_custom_call.1} parent=5 // pred_check
        %p165 = pneg %p164
      $region14: #{tpu_custom_call.1} parent=5 // pred_check_branch
        %167 = sbr.rel (%p165) target = $region16
      $region15: #{tpu_custom_call.1} parent=5 // pred_region
        // Predicated region
        $region17: #{tpu_custom_call.1} parent=15 // pred_check
          %p168 = pneg %p59
        $region18: #{tpu_custom_call.1} parent=15 // pred_check_branch
          %170 = sbr.rel (%p168) target = $region20
        $region19: #{tpu_custom_call.1} parent=15 // pred_region
          %s171 = sand.u32 %s49, 1
          %s172 = scalar_lea.sflag [#allocation7], %s171
          %s173 = sand.u32 %s49, 1
          %s174 = smul.addr %s173, 32
          %s175 = scalar_lea.vmem [#allocation6], %s174
          %s176 = smul.u32 4, %s25
          %178 = vsyncadd %s172, 0
          %s179 = sadd.s32 %s26, %s176
          %s180 = smul.addr %s179, 8
          %s181 = scalar_lea.hbm %s0, %s180
          %s182 = sshll.u32 %s181, 4
          %s183 = int_to_ptr.hbm [resolvable:$true] %s182
          %s184 = sshll.u32 %s175, 4
          %s185 = int_to_ptr.vmem [resolvable:$true] %s184
          %190 = dma.hbm_to_vmem [thread:$0]  %s183, 512, %s185, %s172, 128, 128, 8
        $region20: #{tpu_custom_call.1} parent=15 // pred_fallthru
          _
        // Predicated region
        $region21: #{tpu_custom_call.1} parent=15 // pred_check
          %p191 = pneg %p87
        $region22: #{tpu_custom_call.1} parent=15 // pred_check_branch
          %193 = sbr.rel (%p191) target = $region24
        $region23: #{tpu_custom_call.1} parent=15 // pred_region
          %s194 = sand.u32 %s18, 1
          %s195 = scalar_lea.sflag [#allocation10], %s194
          %s196 = sand.u32 %s77, 1
          %s197 = smul.addr %s196, 32
          %s198 = scalar_lea.vmem [#allocation9], %s197
          %s199 = smul.u32 4, %s25
          %201 = vsyncadd %s195, 0
          %s202 = sadd.s32 %s27, %s199
          %s203 = smul.addr %s202, 8
          %s204 = scalar_lea.hbm %s1, %s203
          %s205 = sshll.u32 %s204, 4
          %s206 = int_to_ptr.hbm [resolvable:$true] %s205
          %s207 = sshll.u32 %s198, 4
          %s208 = int_to_ptr.vmem [resolvable:$true] %s207
          %213 = dma.hbm_to_vmem [thread:$0]  %s206, 512, %s208, %s195, 128, 128, 8
        $region24: #{tpu_custom_call.1} parent=15 // pred_fallthru
          _
        // Predicated region
        $region25: #{tpu_custom_call.1} parent=15 // pred_check
          %p214 = pneg %p115
        $region26: #{tpu_custom_call.1} parent=15 // pred_check_branch
          %216 = sbr.rel (%p214) target = $region28
        $region27: #{tpu_custom_call.1} parent=15 // pred_region
          %s217 = sand.u32 %s18, 1
          %s218 = scalar_lea.sflag [#allocation10], %s217
          %s219 = sand.u32 %s105, 1
          %s220 = smul.addr %s219, 32
          %s221 = scalar_lea.vmem [#allocation11], %s220
          %s222 = smul.u32 4, %s25
          %224 = vsyncadd %s218, 0
          %s225 = sadd.s32 %s27, %s222
          %s226 = smul.addr %s225, 8
          %s227 = scalar_lea.hbm %s2, %s226
          %s228 = sshll.u32 %s227, 4
          %s229 = int_to_ptr.hbm [resolvable:$true] %s228
          %s230 = sshll.u32 %s221, 4
          %s231 = int_to_ptr.vmem [resolvable:$true] %s230
          %236 = dma.hbm_to_vmem [thread:$0]  %s229, 512, %s231, %s218, 128, 128, 8
        $region28: #{tpu_custom_call.1} parent=15 // pred_fallthru
          _
      $region16: #{tpu_custom_call.1} parent=5 // pred_fallthru
        _
      %p237 = scmp.le.s32.totalorder 1, %s18
      %p238 = scmp.lt.s32.totalorder %s18, 3
      %p239 = pnand %p237, %p238
      %p240 = pneg %p239
      // Predicated region
      $region29: #{tpu_custom_call.1} parent=5 // pred_check
        _
      $region30: #{tpu_custom_call.1} parent=5 // pred_check_branch
        %242 = sbr.rel (%p239) target = $region32
      $region31: #{tpu_custom_call.1} parent=5 // pred_region
        %s243 = ssub.s32 %s18, 1
        %s244 = sand.u32 %s52, 1
        %s245 = scalar_lea.sflag [#allocation7], %s244
        %s246 = sand.u32 %s52, 1
        %s247 = smul.addr %s246, 32
        %s248 = scalar_lea.vmem [#allocation6], %s247
        // Predicated region
        $region33: #{tpu_custom_call.1} parent=31 // pred_check
          %p249 = pneg %p65
        $region34: #{tpu_custom_call.1} parent=31 // pred_check_branch
          %251 = sbr.rel (%p249) target = $region36
        $region35: #{tpu_custom_call.1} parent=31 // pred_region
          %253 = dma.done %s245, 512
        $region36: #{tpu_custom_call.1} parent=31 // pred_fallthru
          _
        %s254 = sand.u32 %s23, 1
        %s255 = scalar_lea.sflag [#allocation10], %s254
        %s256 = sand.u32 %s80, 1
        %s257 = smul.addr %s256, 32
        %s258 = scalar_lea.vmem [#allocation9], %s257
        // Predicated region
        $region37: #{tpu_custom_call.1} parent=31 // pred_check
          %p259 = pneg %p93
        $region38: #{tpu_custom_call.1} parent=31 // pred_check_branch
          %261 = sbr.rel (%p259) target = $region40
        $region39: #{tpu_custom_call.1} parent=31 // pred_region
          %263 = dma.done %s255, 512
        $region40: #{tpu_custom_call.1} parent=31 // pred_fallthru
          _
        %s264 = sand.u32 %s23, 1
        %s265 = scalar_lea.sflag [#allocation10], %s264
        %s266 = sand.u32 %s108, 1
        %s267 = smul.addr %s266, 32
        %s268 = scalar_lea.vmem [#allocation11], %s267
        // Predicated region
        $region41: #{tpu_custom_call.1} parent=31 // pred_check
          %p269 = pneg %p121
        $region42: #{tpu_custom_call.1} parent=31 // pred_check_branch
          %271 = sbr.rel (%p269) target = $region44
        $region43: #{tpu_custom_call.1} parent=31 // pred_region
          %273 = dma.done %s265, 512
        $region44: #{tpu_custom_call.1} parent=31 // pred_fallthru
          _
        %s274 = sand.u32 %s52, 1
        %s275 = scalar_lea.sflag [#allocation7], %s274
        %s276 = sand.u32 %s52, 1
        %s277 = smul.addr %s276, 32
        %s278 = scalar_lea.vmem [#allocation6], %s277
        %p279 = pneg %p65
        %p280 = pneg %p62
        %s281 = sand.u32 %s23, 1
        %s282 = scalar_lea.sflag [#allocation10], %s281
        %s283 = sand.u32 %s80, 1
        %s284 = smul.addr %s283, 32
        %s285 = scalar_lea.vmem [#allocation9], %s284
        %p286 = pneg %p93
        %p287 = pneg %p90
        %s288 = sand.u32 %s23, 1
        %s289 = scalar_lea.sflag [#allocation10], %s288
        %s290 = sand.u32 %s108, 1
        %s291 = smul.addr %s290, 32
        %s292 = scalar_lea.vmem [#allocation11], %s291
        %p293 = pneg %p121
        %p294 = pneg %p118
        %p295 = pneg %p149
        %p296 = pneg %p146
        %s297 = sand.u32 %s136, 1
        %s298 = scalar_lea.sflag [#allocation8], %s297
        %s299 = sand.u32 %s136, 1
        %s300 = smul.addr %s299, 32
        %s301 = scalar_lea.vmem [#allocation12], %s300
        %s302 = smul.u32 4, %s28
        %s303 = smul.u32 4, %s28
        %s304 = smul.u32 4, %s28
        %s305 = smul.u32 4, %s28
        %p306 = scmp.eq.s32.totalorder %s30, 0
        // Predicated region
        $region45: #{tpu_custom_call.1} parent=31 // pred_check
          %p307 = pneg %p306
        $region46: #{tpu_custom_call.1} parent=31 // pred_check_branch
          %309 = sbr.rel (%p307) target = $region48
        $region47: #{tpu_custom_call.1} parent=31 // pred_region
          %v310 = vld [vmem:[%s248] sm:$0xff]
          %v311 = vld [vmem:[%s248 + $0x8] sm:$0xff]
          %v312 = vld [vmem:[%s248 + $0x10] sm:$0xff]
          %v313 = vld [vmem:[%s248 + $0x18] sm:$0xff]
          %v314 = vmul.f32 %v310, 0.17677669
          %v315 = vmul.f32 %v311, 0.17677669
          %v316 = vmul.f32 %v312, 0.17677669
          %v317 = vmul.f32 %v313, 0.17677669
          %vm318 = vcmask 261120
          %319 = vst.msk [vmem:[#allocation5] sm:$0xff] %vm318, %v314
          %320 = vst.msk [vmem:[#allocation5 + $0x8] sm:$0xff] %vm318, %v315
          %321 = vst.msk [vmem:[#allocation5 + $0x10] sm:$0xff] %vm318, %v316
          %322 = vst.msk [vmem:[#allocation5 + $0x18] sm:$0xff] %vm318, %v317
          %vm323 = vcmask 7168
          %324 = vst.msk [vmem:[#allocation2] sm:$0xff] %vm323, -inf
          %325 = vst.msk [vmem:[#allocation2 + $0x8] sm:$0xff] %vm323, -inf
          %326 = vst.msk [vmem:[#allocation2 + $0x10] sm:$0xff] %vm323, -inf
          %327 = vst.msk [vmem:[#allocation2 + $0x18] sm:$0xff] %vm323, -inf
          %328 = vst.msk [vmem:[#allocation3] sm:$0xff] %vm323, 0.0
          %329 = vst.msk [vmem:[#allocation3 + $0x8] sm:$0xff] %vm323, 0.0
          %330 = vst.msk [vmem:[#allocation3 + $0x10] sm:$0xff] %vm323, 0.0
          %331 = vst.msk [vmem:[#allocation3 + $0x18] sm:$0xff] %vm323, 0.0
          %332 = vst.msk [vmem:[#allocation4] sm:$0xff] %vm318, 0.0
          %333 = vst.msk [vmem:[#allocation4 + $0x8] sm:$0xff] %vm318, 0.0
          %334 = vst.msk [vmem:[#allocation4 + $0x10] sm:$0xff] %vm318, 0.0
          %335 = vst.msk [vmem:[#allocation4 + $0x18] sm:$0xff] %vm318, 0.0
        $region48: #{tpu_custom_call.1} parent=31 // pred_fallthru
          _
        %v336 = vld [vmem:[#allocation5] sm:$0xff]
        %v337 = vld [vmem:[#allocation5 + $0x8] sm:$0xff]
        %v338 = vld [vmem:[#allocation5 + $0x10] sm:$0xff]
        %v339 = vld [vmem:[#allocation5 + $0x18] sm:$0xff]
        %v340 = vld [vmem:[%s258] sm:$0xff]
        %v341 = vld [vmem:[%s258 + $0x8] sm:$0xff]
        %v342 = vld [vmem:[%s258 + $0x10] sm:$0xff]
        %v343 = vld [vmem:[%s258 + $0x18] sm:$0xff]
        %vm344 = vcmask 261120
        %v346 = vsel %vm344, %v336, 0
        %v349 = vsel %vm344, %v340, 0
        %351 = vmatpush.xpose.msra.mxu0 0.0
        %352 = vmatpush.xpose.msra.mxu0 0.0
        %353 = vmatpush.xpose.msra.mxu0 0.0
        %354 = vmatpush.xpose.msra.mxu0 0.0
        %355 = vmatpush.xpose.msra.mxu0 0.0
        %356 = vmatpush.xpose.msra.mxu0 0.0
        %357 = vmatpush.xpose.msra.mxu0 0.0
        %358 = vmatpush.xpose.msra.mxu0 0.0
        %359 = vmatpush.xpose.msra.mxu0 0.0
        %360 = vmatpush.xpose.msra.mxu0 0.0
        %361 = vmatpush.xpose.msra.mxu0 0.0
        %362 = vmatpush.xpose.msra.mxu0 0.0
        %363 = vmatpush.xpose.msra.mxu0 0.0
        %364 = vmatpush.xpose.msra.mxu0 0.0
        %365 = vmatpush.xpose.msra.mxu0 0.0
        %366 = vmatpush.xpose.msra.mxu0 %v349
        %367 = vmatmul.f32.gmra.mxu0 %v346
        %v368 = vpop.f32.mrf.mxu0
        %v369 = vadd.f32 0.0, %v368
        %370 = vdwg.mxu0
        %v372 = vsel %vm344, %v337, 0
        %v375 = vsel %vm344, %v341, 0
        %377 = vmatpush.xpose.msra.mxu0 0.0
        %378 = vmatpush.xpose.msra.mxu0 0.0
        %379 = vmatpush.xpose.msra.mxu0 0.0
        %380 = vmatpush.xpose.msra.mxu0 0.0
        %381 = vmatpush.xpose.msra.mxu0 0.0
        %382 = vmatpush.xpose.msra.mxu0 0.0
        %383 = vmatpush.xpose.msra.mxu0 0.0
        %384 = vmatpush.xpose.msra.mxu0 0.0
        %385 = vmatpush.xpose.msra.mxu0 0.0
        %386 = vmatpush.xpose.msra.mxu0 0.0
        %387 = vmatpush.xpose.msra.mxu0 0.0
        %388 = vmatpush.xpose.msra.mxu0 0.0
        %389 = vmatpush.xpose.msra.mxu0 0.0
        %390 = vmatpush.xpose.msra.mxu0 0.0
        %391 = vmatpush.xpose.msra.mxu0 0.0
        %392 = vmatpush.xpose.msra.mxu0 %v375
        %393 = vmatmul.f32.gmra.mxu0 %v372
        %v394 = vpop.f32.mrf.mxu0
        %v395 = vadd.f32 0.0, %v394
        %396 = vdwg.mxu0
        %v398 = vsel %vm344, %v338, 0
        %v401 = vsel %vm344, %v342, 0
        %403 = vmatpush.xpose.msra.mxu0 0.0
        %404 = vmatpush.xpose.msra.mxu0 0.0
        %405 = vmatpush.xpose.msra.mxu0 0.0
        %406 = vmatpush.xpose.msra.mxu0 0.0
        %407 = vmatpush.xpose.msra.mxu0 0.0
        %408 = vmatpush.xpose.msra.mxu0 0.0
        %409 = vmatpush.xpose.msra.mxu0 0.0
        %410 = vmatpush.xpose.msra.mxu0 0.0
        %411 = vmatpush.xpose.msra.mxu0 0.0
        %412 = vmatpush.xpose.msra.mxu0 0.0
        %413 = vmatpush.xpose.msra.mxu0 0.0
        %414 = vmatpush.xpose.msra.mxu0 0.0
        %415 = vmatpush.xpose.msra.mxu0 0.0
        %416 = vmatpush.xpose.msra.mxu0 0.0
        %417 = vmatpush.xpose.msra.mxu0 0.0
        %418 = vmatpush.xpose.msra.mxu0 %v401
        %419 = vmatmul.f32.gmra.mxu0 %v398
        %v420 = vpop.f32.mrf.mxu0
        %v421 = vadd.f32 0.0, %v420
        %422 = vdwg.mxu0
        %v424 = vsel %vm344, %v339, 0
        %v427 = vsel %vm344, %v343, 0
        %429 = vmatpush.xpose.msra.mxu0 0.0
        %430 = vmatpush.xpose.msra.mxu0 0.0
        %431 = vmatpush.xpose.msra.mxu0 0.0
        %432 = vmatpush.xpose.msra.mxu0 0.0
        %433 = vmatpush.xpose.msra.mxu0 0.0
        %434 = vmatpush.xpose.msra.mxu0 0.0
        %435 = vmatpush.xpose.msra.mxu0 0.0
        %436 = vmatpush.xpose.msra.mxu0 0.0
        %437 = vmatpush.xpose.msra.mxu0 0.0
        %438 = vmatpush.xpose.msra.mxu0 0.0
        %439 = vmatpush.xpose.msra.mxu0 0.0
        %440 = vmatpush.xpose.msra.mxu0 0.0
        %441 = vmatpush.xpose.msra.mxu0 0.0
        %442 = vmatpush.xpose.msra.mxu0 0.0
        %443 = vmatpush.xpose.msra.mxu0 0.0
        %444 = vmatpush.xpose.msra.mxu0 %v427
        %445 = vmatmul.f32.gmra.mxu0 %v424
        %v446 = vpop.f32.mrf.mxu0
        %v447 = vadd.f32 0.0, %v446
        %448 = vdwg.mxu0
        %v449 = vld [vmem:[#allocation2] sm:$0xff]
        %v450 = vld [vmem:[#allocation2 + $0x8] sm:$0xff]
        %v451 = vld [vmem:[#allocation2 + $0x10] sm:$0xff]
        %v452 = vld [vmem:[#allocation2 + $0x18] sm:$0xff]
        %vm453 = vcmask 64512
        %v454 = vsel %vm453, %v369, -inf
        %455 = vmax.xlane.f32.xlu0 %v454
        %v456 = vpop.xlane.xlu0 %455
        %v457 = vsel %vm453, %v395, -inf
        %458 = vmax.xlane.f32.xlu0 %v457
        %v459 = vpop.xlane.xlu0 %458
        %v460 = vsel %vm453, %v421, -inf
        %461 = vmax.xlane.f32.xlu0 %v460
        %v462 = vpop.xlane.xlu0 %461
        %v463 = vsel %vm453, %v447, -inf
        %464 = vmax.xlane.f32.xlu0 %v463
        %v465 = vpop.xlane.xlu0 %464
        %v466 = vmax.f32 %v449, %v456
        %v467 = vmax.f32 %v450, %v459
        %v468 = vmax.f32 %v451, %v462
        %v469 = vmax.f32 %v452, %v465
        %v470 = vsub.f32 %v449, %v466
        %v471 = vsub.f32 %v450, %v467
        %v472 = vsub.f32 %v451, %v468
        %v473 = vsub.f32 %v452, %v469
        %v474 = vmul.f32 %v470, 1.442695
        %v475 = vpow.pop %v474
        %v476 = vmul.f32 %v471, 1.442695
        %v477 = vpow.pop %v476
        %v478 = vmul.f32 %v472, 1.442695
        %v479 = vpow.pop %v478
        %v480 = vmul.f32 %v473, 1.442695
        %v481 = vpow.pop %v480
        %483 = vset.pattern.permute.xlu0 0
        %484 = vperm.xlu0 %483, %v466
        %v485 = vpop.permute.xlu0 %484
        %488 = vset.pattern.permute.xlu0 0
        %489 = vperm.xlu0 %488, %v467
        %v490 = vpop.permute.xlu0 %489
        %493 = vset.pattern.permute.xlu0 0
        %494 = vperm.xlu0 %493, %v468
        %v495 = vpop.permute.xlu0 %494
        %498 = vset.pattern.permute.xlu0 0
        %499 = vperm.xlu0 %498, %v469
        %v500 = vpop.permute.xlu0 %499
        %v502 = vsub.f32 %v369, %v485
        %v503 = vsub.f32 %v395, %v490
        %v504 = vsub.f32 %v421, %v495
        %v505 = vsub.f32 %v447, %v500
        %v506 = vmul.f32 %v502, 1.442695
        %v507 = vpow.pop %v506
        %v508 = vmul.f32 %v503, 1.442695
        %v509 = vpow.pop %v508
        %v510 = vmul.f32 %v504, 1.442695
        %v511 = vpow.pop %v510
        %v512 = vmul.f32 %v505, 1.442695
        %v513 = vpow.pop %v512
        %v514 = vld [vmem:[#allocation3] sm:$0xff]
        %v515 = vld [vmem:[#allocation3 + $0x8] sm:$0xff]
        %v516 = vld [vmem:[#allocation3 + $0x10] sm:$0xff]
        %v517 = vld [vmem:[#allocation3 + $0x18] sm:$0xff]
        %v518 = vmul.f32 %v475, %v514
        %v519 = vmul.f32 %v477, %v515
        %v520 = vmul.f32 %v479, %v516
        %v521 = vmul.f32 %v481, %v517
        %v522 = vsel %vm453, %v507, 0.0
        %523 = vadd.xlane.f32.xlu0 %v522
        %v524 = vpop.xlane.xlu0 %523
        %v525 = vsel %vm453, %v509, 0.0
        %526 = vadd.xlane.f32.xlu0 %v525
        %v527 = vpop.xlane.xlu0 %526
        %v528 = vsel %vm453, %v511, 0.0
        %529 = vadd.xlane.f32.xlu0 %v528
        %v530 = vpop.xlane.xlu0 %529
        %v531 = vsel %vm453, %v513, 0.0
        %532 = vadd.xlane.f32.xlu0 %v531
        %v533 = vpop.xlane.xlu0 %532
        %v534 = vadd.f32 %v518, %v524
        %v535 = vadd.f32 %v519, %v527
        %v536 = vadd.f32 %v520, %v530
        %v537 = vadd.f32 %v521, %v533
        %vm538 = vcmask 7168
        %539 = vst.msk [vmem:[#allocation3] sm:$0xff] %vm538, %v534
        %540 = vst.msk [vmem:[#allocation3 + $0x8] sm:$0xff] %vm538, %v535
        %541 = vst.msk [vmem:[#allocation3 + $0x10] sm:$0xff] %vm538, %v536
        %542 = vst.msk [vmem:[#allocation3 + $0x18] sm:$0xff] %vm538, %v537
        %v543 = vld [vmem:[%s268] sm:$0xff]
        %v544 = vld [vmem:[%s268 + $0x8] sm:$0xff]
        %v545 = vld [vmem:[%s268 + $0x10] sm:$0xff]
        %v546 = vld [vmem:[%s268 + $0x18] sm:$0xff]
        %v548 = vsel %vm453, %v507, 0
        %550 = vmatpush.msra.mxu0 0.0
        %551 = vmatpush.msra.mxu0 0.0
        %552 = vmatpush.msra.mxu0 0.0
        %553 = vmatpush.msra.mxu0 0.0
        %554 = vmatpush.msra.mxu0 0.0
        %555 = vmatpush.msra.mxu0 0.0
        %556 = vmatpush.msra.mxu0 0.0
        %557 = vmatpush.msra.mxu0 0.0
        %558 = vmatpush.msra.mxu0 0.0
        %559 = vmatpush.msra.mxu0 0.0
        %560 = vmatpush.msra.mxu0 0.0
        %561 = vmatpush.msra.mxu0 0.0
        %562 = vmatpush.msra.mxu0 0.0
        %563 = vmatpush.msra.mxu0 0.0
        %564 = vmatpush.msra.mxu0 0.0
        %565 = vmatpush.msra.mxu0 %v543
        %566 = vmatmul.f32.gmra.mxu0 %v548
        %v567 = vpop.f32.mrf.mxu0
        %v568 = vadd.f32 0.0, %v567
        %569 = vdwg.mxu0
        %v571 = vsel %vm453, %v509, 0
        %573 = vmatpush.msra.mxu0 0.0
        %574 = vmatpush.msra.mxu0 0.0
        %575 = vmatpush.msra.mxu0 0.0
        %576 = vmatpush.msra.mxu0 0.0
        %577 = vmatpush.msra.mxu0 0.0
        %578 = vmatpush.msra.mxu0 0.0
        %579 = vmatpush.msra.mxu0 0.0
        %580 = vmatpush.msra.mxu0 0.0
        %581 = vmatpush.msra.mxu0 0.0
        %582 = vmatpush.msra.mxu0 0.0
        %583 = vmatpush.msra.mxu0 0.0
        %584 = vmatpush.msra.mxu0 0.0
        %585 = vmatpush.msra.mxu0 0.0
        %586 = vmatpush.msra.mxu0 0.0
        %587 = vmatpush.msra.mxu0 0.0
        %588 = vmatpush.msra.mxu0 %v544
        %589 = vmatmul.f32.gmra.mxu0 %v571
        %v590 = vpop.f32.mrf.mxu0
        %v591 = vadd.f32 0.0, %v590
        %592 = vdwg.mxu0
        %v594 = vsel %vm453, %v511, 0
        %596 = vmatpush.msra.mxu0 0.0
        %597 = vmatpush.msra.mxu0 0.0
        %598 = vmatpush.msra.mxu0 0.0
        %599 = vmatpush.msra.mxu0 0.0
        %600 = vmatpush.msra.mxu0 0.0
        %601 = vmatpush.msra.mxu0 0.0
        %602 = vmatpush.msra.mxu0 0.0
        %603 = vmatpush.msra.mxu0 0.0
        %604 = vmatpush.msra.mxu0 0.0
        %605 = vmatpush.msra.mxu0 0.0
        %606 = vmatpush.msra.mxu0 0.0
        %607 = vmatpush.msra.mxu0 0.0
        %608 = vmatpush.msra.mxu0 0.0
        %609 = vmatpush.msra.mxu0 0.0
        %610 = vmatpush.msra.mxu0 0.0
        %611 = vmatpush.msra.mxu0 %v545
        %612 = vmatmul.f32.gmra.mxu0 %v594
        %v613 = vpop.f32.mrf.mxu0
        %v614 = vadd.f32 0.0, %v613
        %615 = vdwg.mxu0
        %v617 = vsel %vm453, %v513, 0
        %619 = vmatpush.msra.mxu0 0.0
        %620 = vmatpush.msra.mxu0 0.0
        %621 = vmatpush.msra.mxu0 0.0
        %622 = vmatpush.msra.mxu0 0.0
        %623 = vmatpush.msra.mxu0 0.0
        %624 = vmatpush.msra.mxu0 0.0
        %625 = vmatpush.msra.mxu0 0.0
        %626 = vmatpush.msra.mxu0 0.0
        %627 = vmatpush.msra.mxu0 0.0
        %628 = vmatpush.msra.mxu0 0.0
        %629 = vmatpush.msra.mxu0 0.0
        %630 = vmatpush.msra.mxu0 0.0
        %631 = vmatpush.msra.mxu0 0.0
        %632 = vmatpush.msra.mxu0 0.0
        %633 = vmatpush.msra.mxu0 0.0
        %634 = vmatpush.msra.mxu0 %v546
        %635 = vmatmul.f32.gmra.mxu0 %v617
        %v636 = vpop.f32.mrf.mxu0
        %v637 = vadd.f32 0.0, %v636
        %638 = vdwg.mxu0
        %v639 = vld [vmem:[#allocation4] sm:$0xff]
        %v640 = vld [vmem:[#allocation4 + $0x8] sm:$0xff]
        %v641 = vld [vmem:[#allocation4 + $0x10] sm:$0xff]
        %v642 = vld [vmem:[#allocation4 + $0x18] sm:$0xff]
        %644 = vset.pattern.permute.xlu0 0
        %645 = vperm.xlu0 %644, %v475
        %v646 = vpop.permute.xlu0 %645
        %649 = vset.pattern.permute.xlu0 0
        %650 = vperm.xlu0 %649, %v477
        %v651 = vpop.permute.xlu0 %650
        %654 = vset.pattern.permute.xlu0 0
        %655 = vperm.xlu0 %654, %v479
        %v656 = vpop.permute.xlu0 %655
        %659 = vset.pattern.permute.xlu0 0
        %660 = vperm.xlu0 %659, %v481
        %v661 = vpop.permute.xlu0 %660
        %v663 = vmul.f32 %v646, %v639
        %v664 = vmul.f32 %v651, %v640
        %v665 = vmul.f32 %v656, %v641
        %v666 = vmul.f32 %v661, %v642
        %v667 = vadd.f32 %v663, %v568
        %v668 = vadd.f32 %v664, %v591
        %v669 = vadd.f32 %v665, %v614
        %v670 = vadd.f32 %v666, %v637
        %671 = vst.msk [vmem:[#allocation4] sm:$0xff] %vm344, %v667
        %672 = vst.msk [vmem:[#allocation4 + $0x8] sm:$0xff] %vm344, %v668
        %673 = vst.msk [vmem:[#allocation4 + $0x10] sm:$0xff] %vm344, %v669
        %674 = vst.msk [vmem:[#allocation4 + $0x18] sm:$0xff] %vm344, %v670
        %675 = vst.msk [vmem:[#allocation2] sm:$0xff] %vm538, %v466
        %676 = vst.msk [vmem:[#allocation2 + $0x8] sm:$0xff] %vm538, %v467
        %677 = vst.msk [vmem:[#allocation2 + $0x10] sm:$0xff] %vm538, %v468
        %678 = vst.msk [vmem:[#allocation2 + $0x18] sm:$0xff] %vm538, %v469
        // Predicated region
        $region49: #{tpu_custom_call.1} parent=31 // pred_check
          %p679 = pneg %p306
        $region50: #{tpu_custom_call.1} parent=31 // pred_check_branch
          %681 = sbr.rel (%p679) target = $region52
        $region51: #{tpu_custom_call.1} parent=31 // pred_region
          %v682 = vld [vmem:[#allocation3] sm:$0xff]
          %v683 = vld [vmem:[#allocation3 + $0x8] sm:$0xff]
          %v684 = vld [vmem:[#allocation3 + $0x10] sm:$0xff]
          %v685 = vld [vmem:[#allocation3 + $0x18] sm:$0xff]
          %v686 = vrcp.pop %v682
          %v687 = vrcp.pop %v683
          %v688 = vrcp.pop %v684
          %v689 = vrcp.pop %v685
          %v690 = vld [vmem:[#allocation4] sm:$0xff]
          %v691 = vld [vmem:[#allocation4 + $0x8] sm:$0xff]
          %v692 = vld [vmem:[#allocation4 + $0x10] sm:$0xff]
          %v693 = vld [vmem:[#allocation4 + $0x18] sm:$0xff]
          %695 = vset.pattern.permute.xlu0 0
          %696 = vperm.xlu0 %695, %v686
          %v697 = vpop.permute.xlu0 %696
          %700 = vset.pattern.permute.xlu0 0
          %701 = vperm.xlu0 %700, %v687
          %v702 = vpop.permute.xlu0 %701
          %705 = vset.pattern.permute.xlu0 0
          %706 = vperm.xlu0 %705, %v688
          %v707 = vpop.permute.xlu0 %706
          %710 = vset.pattern.permute.xlu0 0
          %711 = vperm.xlu0 %710, %v689
          %v712 = vpop.permute.xlu0 %711
          %v714 = vmul.f32 %v690, %v697
          %v715 = vmul.f32 %v691, %v702
          %v716 = vmul.f32 %v692, %v707
          %v717 = vmul.f32 %v693, %v712
          %718 = vst.msk [vmem:[%s301] sm:$0xff] %vm344, %v714
          %719 = vst.msk [vmem:[%s301 + $0x8] sm:$0xff] %vm344, %v715
          %720 = vst.msk [vmem:[%s301 + $0x10] sm:$0xff] %vm344, %v716
          %721 = vst.msk [vmem:[%s301 + $0x18] sm:$0xff] %vm344, %v717
        $region52: #{tpu_custom_call.1} parent=31 // pred_fallthru
          _
        %s722 = sand.u32 %s136, 1
        %s723 = scalar_lea.sflag [#allocation8], %s722
        %s724 = sand.u32 %s136, 1
        %s725 = smul.addr %s724, 32
        %s726 = scalar_lea.vmem [#allocation12], %s725
        // Predicated region
        $region53: #{tpu_custom_call.1} parent=31 // pred_check
          %p727 = pneg %p146
        $region54: #{tpu_custom_call.1} parent=31 // pred_check_branch
          %729 = sbr.rel (%p727) target = $region56
        $region55: #{tpu_custom_call.1} parent=31 // pred_region
          %s730 = smul.u32 4, %s28
          %732 = vsyncadd %s723, 0
          %s733 = sadd.s32 %s29, %s730
          %s734 = smul.addr %s733, 8
          %s735 = scalar_lea.hbm %s3, %s734
          %s736 = sshll.u32 %s726, 4
          %s737 = int_to_ptr.vmem [resolvable:$true] %s736
          %s738 = sshll.u32 %s735, 4
          %s739 = int_to_ptr.hbm [resolvable:$true] %s738
          %744 = dma.vmem_to_hbm [thread:$0]  %s737, 512, %s739, %s723, 128, 128, 8
        $region56: #{tpu_custom_call.1} parent=31 // pred_fallthru
          _
      $region32: #{tpu_custom_call.1} parent=5 // pred_fallthru
        _
      %p745 = scmp.le.s32.totalorder 2, %s18
      // Predicated region
      $region57: #{tpu_custom_call.1} parent=5 // pred_check
        %p746 = pneg %p745
      $region58: #{tpu_custom_call.1} parent=5 // pred_check_branch
        %748 = sbr.rel (%p746) target = $region60
      $region59: #{tpu_custom_call.1} parent=5 // pred_region
        %s749 = ssub.s32 %s18, 2
        // Predicated region
        $region61: #{tpu_custom_call.1} parent=59 // pred_check
          %p750 = pneg %p152
        $region62: #{tpu_custom_call.1} parent=59 // pred_check_branch
          %752 = sbr.rel (%p750) target = $region64
        $region63: #{tpu_custom_call.1} parent=59 // pred_region
          %s753 = sand.u32 %s137, 1
          %s754 = scalar_lea.sflag [#allocation8], %s753
          %s755 = sand.u32 %s137, 1
          %s756 = smul.addr %s755, 32
          %s757 = scalar_lea.vmem [#allocation12], %s756
          %759 = dma.done %s754, 512
        $region64: #{tpu_custom_call.1} parent=59 // pred_fallthru
          _
      $region60: #{tpu_custom_call.1} parent=5 // pred_fallthru
        _
    $region6: #{tpu_custom_call.1} parent=1 // loop_footer
      %s22 = sadd.s32 1, %s18
    $region7: #{tpu_custom_call.1} parent=1 // loop_footer_branch
      %17 = sbr.rel target = $region3
    $region8: #{tpu_custom_call.1} parent=1 // loop_exit
      _
    %760 = vsyncpa [#allocation7], 1
    %s761 = scalar_lea.sflag [#allocation7], 1
    %762 = vsyncpa %s761, 1
    %763 = vsyncpa [#allocation10], 1
    %s764 = scalar_lea.sflag [#allocation10], 1
    %765 = vsyncpa %s764, 1
    %766 = vsyncpa [#allocation8], 1
    %s767 = scalar_lea.sflag [#allocation8], 1
    %768 = vsyncpa %s767, 1

</llo_original>
